<compile_context>
chip_gen: v7x
topology: tpu7x:2x2x1
jax: 0.10.0
libtpu: 0.0.40
codegen_flags: <defaults>
</compile_context>

<pallas_src>
import math

import jax
import jax.numpy as jnp
from jax.experimental import pallas as pl
from jax.experimental.pallas import tpu as pltpu


def fully_conv_kernel(x_ref, w_ref, b_ref, o_ref):
    """One grid step: (Nb, C, Pt) input tile -> (Nb, Pt) output tile.

    x_ref: (Nb, C, Pt) VMEM tile (Pt is a multiple of 128 -> lane dense)
    w_ref: (C,)        SMEM conv weight, f32 (read as scalars)
    b_ref: (1,)        SMEM conv bias, f32
    o_ref: (Nb, Pt)    VMEM tile
    """
    C = x_ref.shape[1]
    # Explicit per-channel accumulation: scalar-from-SMEM multiplies on the VPU,
    # f32 accumulator of the *output* block size only (no (Nb, C, Pt) temporary).
    # Static unroll is fine for realistic ASTGCN channel counts (C <= a few hundred).
    acc = x_ref[:, 0, :].astype(jnp.float32) * w_ref[0]
    for c in range(1, C):
        acc = acc + x_ref[:, c, :].astype(jnp.float32) * w_ref[c]
    o_ref[...] = (acc + b_ref[0]).astype(o_ref.dtype)


def _choose_tiling(N, C, P, itemsize, target_block_bytes):
    """Pick (Nb, Pt) for the (N, C, P) input / (N, P) output.

    Constraints:
      * Pt is a multiple of 128 (lane-dense loads/stores).
      * Nb is a multiple of 8 or equal to N (sublane-dense output stores, and the
        TPU (8,128) block rule for the 2-D output).
      * Nb * C * Pt * itemsize ~<= target_block_bytes (double-buffered input block).
    """
    p_full = pl.cdiv(P, 128) * 128          # lane-aligned spatial extent
    nb_min = N if N <= 8 else 8             # minimum batch fold satisfying sublane rule
    row_bytes = max(C * itemsize, 1)

    # Lane-tile budget at the minimum batch fold.
    max_pt = max(128, (target_block_bytes // (nb_min * row_bytes)) // 128 * 128)

    if p_full <= max_pt:
        # One lane tile covers all of P: fold batch rows into the block.
        Pt = p_full
        nb_cap = max(1, target_block_bytes // max(C * Pt * itemsize, 1))
        if nb_cap >= N:
            Nb = N
        elif N > 8:
            Nb = min(N, max(8, (nb_cap // 8) * 8))
        else:
            Nb = N
    else:
        # Split P into the fewest roughly-equal 128-aligned chunks under the byte cap:
        # even grid along P (balances v7x's two TensorCores, minimal overhang tile).
        n_chunks = pl.cdiv(p_full, max_pt)
        Pt = pl.cdiv(pl.cdiv(p_full, n_chunks), 128) * 128
        Nb = nb_min
    return Nb, Pt


def fully_conv_layer(x, weight, bias, *, target_block_bytes=8 * 1024 * 1024):
    """Pallas equivalent of nn.Conv2d(C, 1, kernel_size=1) forward.

    x:      (N, C, H, W)
    weight: (1, C, 1, 1)
    bias:   (1,)
    returns (N, 1, H, W)
    """
    N, C, H, W = x.shape
    P = H * W
    itemsize = jnp.dtype(x.dtype).itemsize

    Nb, Pt = _choose_tiling(N, C, P, itemsize, target_block_bytes)

    # Free layout change: flatten spatial dims onto the lane axis (contiguous merge,
    # no data movement). No padding — Pallas masks the overhanging last blocks.
    x2 = x.reshape(N, C, P)
    w = weight.reshape(C).astype(jnp.float32)
    b = bias.reshape(1).astype(jnp.float32)

    grid = (pl.cdiv(N, Nb), pl.cdiv(P, Pt))

    cost = pl.CostEstimate(
        flops=2 * N * C * P,
        transcendentals=0,
        bytes_accessed=N * C * P * itemsize + N * P * itemsize,
    )

    out = pl.pallas_call(
        fully_conv_kernel,
        out_shape=jax.ShapeDtypeStruct((N, P), x.dtype),
        grid=grid,
        in_specs=[
            pl.BlockSpec((Nb, C, Pt), lambda n, p: (n, 0, p)),
            pl.BlockSpec(memory_space=pltpu.MemorySpace.SMEM),   # weight (C,) scalars
            pl.BlockSpec(memory_space=pltpu.MemorySpace.SMEM),   # bias (1,) scalar
        ],
        out_specs=pl.BlockSpec((Nb, Pt), lambda n, p: (n, p)),
        compiler_params=pltpu.CompilerParams(
            dimension_semantics=("parallel", "parallel"),
            vmem_limit_bytes=48 * 1024 * 1024,
        ),
        cost_estimate=cost,
    )(x2, w, b)

    # Free reshape back to NCHW with the single output channel.
    return out.reshape(N, 1, H, W)


if __name__ == "__main__":
    # Small shapes consistent with the module: batch=2, channels=4, spatial 16x16.
    N, C, H, W = 2, 4, 16, 16

    key = jax.random.PRNGKey(0)
    kx, kw, kb = jax.random.split(key, 3)

    x = jax.random.normal(kx, (N, C, H, W), dtype=jnp.float32)

    # Parameter init mirroring PyTorch Conv2d default
    # (uniform(-1/sqrt(fan_in), 1/sqrt(fan_in)) with fan_in = C * 1 * 1).
    bound = 1.0 / math.sqrt(C)
    weight = jax.random.uniform(kw, (1, C, 1, 1), jnp.float32, -bound, bound)
    bias = jax.random.uniform(kb, (1,), jnp.float32, -bound, bound)

    out = fully_conv_layer(x, weight, bias)
    out = jax.block_until_ready(out)

    # Pure-JAX reference for correctness.
    ref = (jnp.einsum("nchw,c->nhw", x, weight.reshape(C))[:, None, :, :]
           + bias.reshape(1, 1, 1, 1))
    assert out.shape == (N, 1, H, W)
    assert jnp.allclose(out, ref, atol=1e-5, rtol=1e-5)

    print("KERNEL_OK")
</pallas_src>

<mosaic_0001>
module attributes {stable_mosaic.version = 11 : i64} {
  func.func @fully_conv_kernel(%arg0: i32, %arg1: i32, %arg2: memref<2x4x256xf32, #tpu.memory_space<vmem>>, %arg3: memref<4xf32, #tpu.memory_space<smem>>, %arg4: memref<1xf32, #tpu.memory_space<smem>>, %arg5: memref<2x256xf32, #tpu.memory_space<vmem>>) attributes {dimension_semantics = [#tpu.dimension_semantics<parallel>, #tpu.dimension_semantics<parallel>], iteration_bounds = array<i64: 1, 1>, scalar_prefetch = 0 : i64, scratch_operands = 0 : i64, tpu.core_type = #tpu.core_type<tc>, window_params = [{transform_indices = @transform_0, window_bounds = array<i64: 2, 4, 256>}, {transform_indices = @transform_1, window_bounds = array<i64: 4>}, {transform_indices = @transform_2, window_bounds = array<i64: 1>}, {transform_indices = @transform_3, window_bounds = array<i64: 2, 256>}]} {
    %c0 = arith.constant 0 : index
    %c0_0 = arith.constant 0 : index
    %c0_1 = arith.constant 0 : index
    %0 = vector.load %arg2[%c0, %c0_0, %c0_1] : memref<2x4x256xf32, #tpu.memory_space<vmem>>, vector<2x1x256xf32>
    %1 = vector.shape_cast %0 : vector<2x1x256xf32> to vector<2x256xf32>
    %c0_2 = arith.constant 0 : index
    %2 = memref.load %arg3[%c0_2] : memref<4xf32, #tpu.memory_space<smem>>
    %3 = vector.broadcast %2 : f32 to vector<2x256xf32>
    %4 = arith.mulf %1, %3 : vector<2x256xf32>
    %c0_3 = arith.constant 0 : index
    %c1 = arith.constant 1 : index
    %c0_4 = arith.constant 0 : index
    %5 = vector.load %arg2[%c0_3, %c1, %c0_4] : memref<2x4x256xf32, #tpu.memory_space<vmem>>, vector<2x1x256xf32>
    %6 = vector.shape_cast %5 : vector<2x1x256xf32> to vector<2x256xf32>
    %c1_5 = arith.constant 1 : index
    %7 = memref.load %arg3[%c1_5] : memref<4xf32, #tpu.memory_space<smem>>
    %8 = vector.broadcast %7 : f32 to vector<2x256xf32>
    %9 = arith.mulf %6, %8 : vector<2x256xf32>
    %10 = arith.addf %4, %9 : vector<2x256xf32>
    %c0_6 = arith.constant 0 : index
    %c2 = arith.constant 2 : index
    %c0_7 = arith.constant 0 : index
    %11 = vector.load %arg2[%c0_6, %c2, %c0_7] : memref<2x4x256xf32, #tpu.memory_space<vmem>>, vector<2x1x256xf32>
    %12 = vector.shape_cast %11 : vector<2x1x256xf32> to vector<2x256xf32>
    %c2_8 = arith.constant 2 : index
    %13 = memref.load %arg3[%c2_8] : memref<4xf32, #tpu.memory_space<smem>>
    %14 = vector.broadcast %13 : f32 to vector<2x256xf32>
    %15 = arith.mulf %12, %14 : vector<2x256xf32>
    %16 = arith.addf %10, %15 : vector<2x256xf32>
    %c0_9 = arith.constant 0 : index
    %c3 = arith.constant 3 : index
    %c0_10 = arith.constant 0 : index
    %17 = vector.load %arg2[%c0_9, %c3, %c0_10] : memref<2x4x256xf32, #tpu.memory_space<vmem>>, vector<2x1x256xf32>
    %18 = vector.shape_cast %17 : vector<2x1x256xf32> to vector<2x256xf32>
    %c3_11 = arith.constant 3 : index
    %19 = memref.load %arg3[%c3_11] : memref<4xf32, #tpu.memory_space<smem>>
    %20 = vector.broadcast %19 : f32 to vector<2x256xf32>
    %21 = arith.mulf %18, %20 : vector<2x256xf32>
    %22 = arith.addf %16, %21 : vector<2x256xf32>
    %c0_12 = arith.constant 0 : index
    %23 = memref.load %arg4[%c0_12] : memref<1xf32, #tpu.memory_space<smem>>
    %24 = vector.broadcast %23 : f32 to vector<2x256xf32>
    %25 = arith.addf %22, %24 : vector<2x256xf32>
    %c0_13 = arith.constant 0 : index
    %c0_14 = arith.constant 0 : index
    %26 = vector.load %arg5[%c0_13, %c0_14] : memref<2x256xf32, #tpu.memory_space<vmem>>, vector<2x256xf32>
    tpu.vector_store %arg5[%c0_13, %c0_14], %25 {strides = array<i32>} : memref<2x256xf32, #tpu.memory_space<vmem>>, vector<2x256xf32>,
    return
  }
  func.func @transform_0(%arg0: i32, %arg1: i32) -> (i32, i32, i32) {
    %c0_i32 = arith.constant 0 : i32
    %c0_i32_0 = arith.constant 0 : i32
    return %arg0, %c0_i32, %arg1 : i32, i32, i32
  }
  func.func @transform_1(%arg0: i32, %arg1: i32) -> i32 {
    %c0_i32 = arith.constant 0 : i32
    %c0_i32_0 = arith.constant 0 : i32
    return %c0_i32 : i32
  }
  func.func @transform_2(%arg0: i32, %arg1: i32) -> i32 {
    %c0_i32 = arith.constant 0 : i32
    %c0_i32_0 = arith.constant 0 : i32
    return %c0_i32 : i32
  }
  func.func @transform_3(%arg0: i32, %arg1: i32) -> (i32, i32) {
    %c0_i32 = arith.constant 0 : i32
    return %arg0, %arg1 : i32, i32
  }
}

</mosaic_0001>

<llo_original>
// kernel: tpu_custom_call.1
$region0: #{tpu_custom_call.1}
  #allocation0 [shape = 'u32[]', space=smem, size = 0x4, offset = 0x4, fixed_abs, tag = 'smem constant byte address 0x4 - core index']
  #allocation1 [shape = 'u32[144,128]{1,0:T(1,128)}', space=vmem, size = 0x12000, scoped, tag = 'internal scratch']
  #allocation2 [shape = 'f32[1]{0:T(128)S(6)}', space=smem, size = 0x200, scoped, tag = 'scoped memory for tpu_custom_call.1']
  %s0 = inlined_call_operand.hbm [shape: f32[2,4,256], index: 0, kind: input, shape index: {}]
  %s1 = inlined_call_operand.vmem [shape: f32[4], index: 1, kind: input, shape index: {}]
  %s2 = inlined_call_operand.<no memory space> [shape: f32[1], index: 2, kind: input, shape index: {}]
  %s3 = inlined_call_operand.hbm [shape: f32[2,256], index: 3, kind: output, shape index: {}]
  %s4 = sld [smem:[#allocation0]]
  $region30: #{tpu_custom_call.1} parent=0
    _
  %s6 = ssub.s32 1, %s4
  %s7 = scalar_select 0, %s6, %s4
  %8 = sst [smem:[#allocation2]] %s2
  $region1: #{tpu_custom_call.1} parent=0
    #allocation3 [shape = 'u8[8192]{0}', space=vmem, size = 0x2000, scoped, tag = 'input window, operand 0, single buffered']
    #allocation4 [shape = 's32[1]{0}', space=sflag, size = 0x4, scoped, tag = 'scoped memory for tpu_custom_call.1']
    #allocation5 [shape = 's32[1]{0}', space=sflag, size = 0x4, scoped, tag = 'scoped memory for tpu_custom_call.1']
    #allocation6 [shape = 's32[1]{0}', space=sflag, size = 0x4, scoped, tag = 'scoped memory for tpu_custom_call.1']
    #allocation7 [shape = 'u8[512]{0}', space=smem, size = 0x200, scoped, tag = 'input window, operand 1, single buffered']
    #allocation8 [shape = 'u8[2048]{0}', space=vmem, size = 0x800, scoped, tag = 'output window, operand 0, single buffered']
    %9 = vsyncpa [#allocation4], 0
    %10 = vsyncpa [#allocation6], 0
    %11 = vsyncpa [#allocation5], 0
    // Predicated region
    $region2: #{tpu_custom_call.1} parent=1 // pred_check
      _
    $region3: #{tpu_custom_call.1} parent=1 // pred_check_branch
      %13 = sbr.rel (0) target = $region5
    $region4: #{tpu_custom_call.1} parent=1 // pred_region
      %s15 = ssub.s32 256, 256
      %16 = vsyncadd [#allocation4], %s15
      %s17 = sshll.u32 [#allocation3], 4
      %s18 = int_to_ptr.vmem [resolvable:$true] %s17
      %23 = dma.hbm_to_vmem [thread:$0]  %s0, 256, %s18, [#allocation4], 128, 128, 8
    $region5: #{tpu_custom_call.1} parent=1 // pred_fallthru
      _
    // Predicated region
    $region6: #{tpu_custom_call.1} parent=1 // pred_check
      _
    $region7: #{tpu_custom_call.1} parent=1 // pred_check_branch
      %25 = sbr.rel (0) target = $region9
    $region8: #{tpu_custom_call.1} parent=1 // pred_region
      %s27 = ssub.s32 16, 16
      %28 = vsyncadd [#allocation6], %s27
      %s30 = sshll.u32 %s1, 4
      %s31 = int_to_ptr.vmem [resolvable:$true] %s30
      %33 = dma.vmem_to_smem %s31, 16, [#allocation7], [#allocation6]
    $region9: #{tpu_custom_call.1} parent=1 // pred_fallthru
      _
    // Predicated region
    $region10: #{tpu_custom_call.1} parent=1 // pred_check
      _
    $region11: #{tpu_custom_call.1} parent=1 // pred_check_branch
      %35 = sbr.rel (0) target = $region13
    $region12: #{tpu_custom_call.1} parent=1 // pred_region
      _
    $region13: #{tpu_custom_call.1} parent=1 // pred_fallthru
      _
    // Predicated region
    $region14: #{tpu_custom_call.1} parent=1 // pred_check
      _
    $region15: #{tpu_custom_call.1} parent=1 // pred_check_branch
      %37 = sbr.rel (0) target = $region17
    $region16: #{tpu_custom_call.1} parent=1 // pred_region
      %38 = dma.done [#allocation4], 256
    $region17: #{tpu_custom_call.1} parent=1 // pred_fallthru
      _
    // Predicated region
    $region18: #{tpu_custom_call.1} parent=1 // pred_check
      _
    $region19: #{tpu_custom_call.1} parent=1 // pred_check_branch
      %40 = sbr.rel (0) target = $region21
    $region20: #{tpu_custom_call.1} parent=1 // pred_region
      %41 = dma.done [#allocation6], 16
    $region21: #{tpu_custom_call.1} parent=1 // pred_fallthru
      _
    %42 = sfence
    %v43 = vld [vmem:[#allocation3] ss:$4 sm:$0x3]
    %s44 = scalar_lea.vmem [#allocation3], 8
    %v45 = vld [vmem:[%s44] ss:$4 sm:$0x3]
    %s46 = sld [smem:[#allocation7]]
    %v47 = vstv %s46
    %v48 = vmul.f32 %v43, %v47
    %v49 = vmul.f32 %v45, %v47
    %s50 = scalar_lea.vmem [#allocation3], 1
    %v51 = vld [vmem:[%s50] ss:$4 sm:$0x3]
    %s52 = scalar_lea.vmem [#allocation3], 9
    %v53 = vld [vmem:[%s52] ss:$4 sm:$0x3]
    %s54 = sld [smem:[#allocation7 + $0x1]]
    %v55 = vstv %s54
    %v56 = vmul.f32 %v51, %v55
    %v57 = vmul.f32 %v53, %v55
    %v58 = vadd.f32 %v48, %v56
    %v59 = vadd.f32 %v49, %v57
    %s60 = scalar_lea.vmem [#allocation3], 2
    %v61 = vld [vmem:[%s60] ss:$4 sm:$0x3]
    %s62 = scalar_lea.vmem [#allocation3], 10
    %v63 = vld [vmem:[%s62] ss:$4 sm:$0x3]
    %s64 = sld [smem:[#allocation7 + $0x2]]
    %v65 = vstv %s64
    %v66 = vmul.f32 %v61, %v65
    %v67 = vmul.f32 %v63, %v65
    %v68 = vadd.f32 %v58, %v66
    %v69 = vadd.f32 %v59, %v67
    %s70 = scalar_lea.vmem [#allocation3], 3
    %v71 = vld [vmem:[%s70] ss:$4 sm:$0x3]
    %s72 = scalar_lea.vmem [#allocation3], 11
    %v73 = vld [vmem:[%s72] ss:$4 sm:$0x3]
    %s74 = sld [smem:[#allocation7 + $0x3]]
    %v75 = vstv %s74
    %v76 = vmul.f32 %v71, %v75
    %v77 = vmul.f32 %v73, %v75
    %v78 = vadd.f32 %v68, %v76
    %v79 = vadd.f32 %v69, %v77
    %s80 = sld [smem:[#allocation2]]
    %v81 = vstv %s80
    %v82 = vadd.f32 %v78, %v81
    %v83 = vadd.f32 %v79, %v81
    %v86 = vcombine.low %v82, %v83
    %v88 = vunpack.c.l.s4 1935823168
    %v89 = vunpack.c.0.s8 %v88
    %v90 = vlaneseq
    %v91 = vshrl.u32 %v90, 7
    %v92 = vsub.s32 %v89, %v91
    %v93 = vrot.slane %v86, %v92
    %95 = vst [vmem:[#allocation8] sm:$0xf] %v93
    // Predicated region
    $region22: #{tpu_custom_call.1} parent=1 // pred_check
      _
    $region23: #{tpu_custom_call.1} parent=1 // pred_check_branch
      %97 = sbr.rel (0) target = $region25
    $region24: #{tpu_custom_call.1} parent=1 // pred_region
      %s99 = ssub.s32 64, 64
      %100 = vsyncadd [#allocation5], %s99
      %s102 = sshll.u32 [#allocation8], 4
      %s103 = int_to_ptr.vmem [resolvable:$true] %s102
      %105 = dma.vmem_to_hbm [thread:$0]  %s103, 64, %s3, [#allocation5]
    $region25: #{tpu_custom_call.1} parent=1 // pred_fallthru
      _
    // Predicated region
    $region26: #{tpu_custom_call.1} parent=1 // pred_check
      _
    $region27: #{tpu_custom_call.1} parent=1 // pred_check_branch
      %107 = sbr.rel (0) target = $region29
    $region28: #{tpu_custom_call.1} parent=1 // pred_region
      %108 = dma.done [#allocation5], 64
    $region29: #{tpu_custom_call.1} parent=1 // pred_fallthru
      _
    %109 = vsyncpa [#allocation4], 1
    %110 = vsyncpa [#allocation5], 1
    %111 = vsyncpa [#allocation6], 1

</llo_original>
